<compile_context>
chip_gen: v5e
topology: v5e:2x2
jax: 0.10.0
libtpu: 0.0.40
codegen_flags: <defaults>
</compile_context>

<pallas_src>
import functools

import jax
import jax.numpy as jnp
from jax.experimental import pallas as pl
from jax.experimental.pallas import tpu as pltpu

# ---- cfg (synthetic, small) -------------------------------------------------
TEXT_DIMENSION = 32
VIDEO_LEN = 8
CONDITION_DIM = 128

T_DIM = TEXT_DIMENSION * VIDEO_LEN      # 256
C_DIM = CONDITION_DIM                   # 128
BATCH = 2

_MAX_TB = 1024                          # keeps double-buffered tile << 16 MiB (v5e scoped default)


def _round_up(x, m):
    return ((x + m - 1) // m) * m


def ca_net_kernel(x_ref, w_ref, b_ref, eps_ref, out_ref):
    # x_ref   : [TB, T_DIM]       f32   (batch tile of text embeddings)
    # w_ref   : [T_DIM, 2*C_DIM]  bf16  (pre-transposed: h = x @ W; VMEM-resident)
    # b_ref   : [1, 2*C_DIM]      f32
    # eps_ref : [TB, C_DIM]       f32   (reparametrization noise)
    # out_ref : [TB, 3*C_DIM]     f32   ([c_code | mu | logvar] lane-dense slab)
    x = x_ref[...].astype(jnp.bfloat16)          # tiny; cast in-kernel
    w = w_ref[...]                               # already bf16 in HBM

    # fc: bf16 MXU matmul with f32 accumulate; bias + relu in f32
    h = jnp.dot(x, w, preferred_element_type=jnp.float32) + b_ref[...]
    h = jnp.maximum(h, 0.0)

    mu = h[:, :C_DIM]                            # 128-lane aligned slices
    logvar = h[:, C_DIM:]

    # reparametrize: std = exp(0.5*logvar); c = eps*std + mu   (all f32)
    std = jnp.exp(0.5 * logvar)
    c_code = eps_ref[...] * std + mu

    # single 384-lane unmasked store: [c_code | mu | logvar]
    out_ref[...] = jnp.concatenate([c_code, h], axis=1).astype(out_ref.dtype)


@functools.partial(jax.jit, static_argnames=())
def ca_net_forward(text_embedding, w_bf16, b, eps):
    """text_embedding: [B, T_DIM] f32, w_bf16: [T_DIM, 2*C_DIM] bf16,
    b: [1, 2*C_DIM] f32, eps: [B, C_DIM] f32 (fresh N(0,1) noise per call).
    Returns (c_code, mu, logvar)."""
    B = text_embedding.shape[0]

    # batch tile: multiple of 8, capped so double-buffered tiles fit every
    # generation's scoped-VMEM default (v5e 16 MiB) with plenty of headroom.
    TB = min(_MAX_TB, _round_up(B, 8))
    Bp = _round_up(B, TB)
    if Bp != B:
        pad = Bp - B
        text_embedding = jnp.pad(text_embedding, ((0, pad), (0, 0)))
        eps = jnp.pad(eps, ((0, pad), (0, 0)))

    grid = (Bp // TB,)

    bytes_accessed = (
        Bp * T_DIM * 4                 # x (f32 in)
        + T_DIM * 2 * C_DIM * 2        # weight (bf16 in, one transfer)
        + 2 * C_DIM * 4                # bias
        + Bp * C_DIM * 4               # eps
        + Bp * 3 * C_DIM * 4           # fused output slab
    )
    cost = pl.CostEstimate(
        flops=2 * Bp * T_DIM * 2 * C_DIM,
        transcendentals=Bp * C_DIM,
        bytes_accessed=bytes_accessed,
    )

    out = pl.pallas_call(
        ca_net_kernel,
        out_shape=jax.ShapeDtypeStruct((Bp, 3 * C_DIM), jnp.float32),
        grid=grid,
        in_specs=[
            pl.BlockSpec((TB, T_DIM), lambda i: (i, 0)),          # x: tiled over M
            pl.BlockSpec((T_DIM, 2 * C_DIM), lambda i: (0, 0)),   # W: VMEM-resident
            pl.BlockSpec((1, 2 * C_DIM), lambda i: (0, 0)),       # b: VMEM-resident
            pl.BlockSpec((TB, C_DIM), lambda i: (i, 0)),          # eps: tiled over M
        ],
        out_specs=pl.BlockSpec((TB, 3 * C_DIM), lambda i: (i, 0)),
        compiler_params=pltpu.CompilerParams(
            dimension_semantics=("parallel",),        # both v7x TCs; no-op on v5e/v6e
            vmem_limit_bytes=32 * 1024 * 1024,        # headroom, under v7x 64 MiB physical
        ),
        cost_estimate=cost,
    )(text_embedding, w_bf16, b, eps)

    c_code = out[:B, :C_DIM]
    mu = out[:B, C_DIM:2 * C_DIM]
    logvar = out[:B, 2 * C_DIM:]
    return c_code, mu, logvar


if __name__ == "__main__":
    key = jax.random.PRNGKey(0)
    k_x, k_w, k_b, k_eps = jax.random.split(key, 4)

    # deterministic parameter init (synthetic; nn.Linear(T_DIM, 2*C_DIM, bias=True))
    text_embedding = jax.random.normal(k_x, (BATCH, T_DIM), dtype=jnp.float32)
    w_f32 = jax.random.normal(k_w, (T_DIM, 2 * C_DIM), dtype=jnp.float32) * 0.02
    w_bf16 = w_f32.astype(jnp.bfloat16)          # weight stored/DMA'd as bf16
    b = jax.random.normal(k_b, (1, 2 * C_DIM), dtype=jnp.float32) * 0.01
    # fresh N(0,1) noise per forward (matches the PyTorch module's normal_())
    eps = jax.random.normal(k_eps, (BATCH, C_DIM), dtype=jnp.float32)

    c_code, mu, logvar = ca_net_forward(text_embedding, w_bf16, b, eps)
    jax.block_until_ready((c_code, mu, logvar))

    # ---- pure-JAX reference (same bf16 matmul path, exact same eps) ----------
    h_ref = jnp.dot(text_embedding.astype(jnp.bfloat16), w_bf16,
                    preferred_element_type=jnp.float32) + b
    h_ref = jnp.maximum(h_ref, 0.0)
    mu_ref = h_ref[:, :C_DIM]
    lv_ref = h_ref[:, C_DIM:]
    c_ref = eps * jnp.exp(0.5 * lv_ref) + mu_ref

    assert c_code.shape == (BATCH, C_DIM)
    assert mu.shape == (BATCH, C_DIM) and logvar.shape == (BATCH, C_DIM)
    assert jnp.allclose(mu, mu_ref, atol=1e-2), "mu mismatch"
    assert jnp.allclose(logvar, lv_ref, atol=1e-2), "logvar mismatch"
    assert jnp.allclose(c_code, c_ref, atol=1e-2), "c_code mismatch"
    assert bool(jnp.all(jnp.isfinite(c_code))), "non-finite c_code"

    # ---- same eps -> same c_code (deterministic replay) ----------------------
    c2, mu2, lv2 = ca_net_forward(text_embedding, w_bf16, b, eps)
    jax.block_until_ready((c2, mu2, lv2))
    assert jnp.allclose(c_code, c2, atol=1e-6), "same eps should reproduce c_code"

    print("KERNEL_OK")
</pallas_src>

<mosaic_0001>
module attributes {stable_mosaic.version = 11 : i64} {
  func.func @ca_net_kernel(%arg0: i32, %arg1: memref<8x256xf32, #tpu.memory_space<vmem>>, %arg2: memref<256x256xbf16, #tpu.memory_space<vmem>>, %arg3: memref<1x256xf32, #tpu.memory_space<vmem>>, %arg4: memref<8x128xf32, #tpu.memory_space<vmem>>, %arg5: memref<8x384xf32, #tpu.memory_space<vmem>>) attributes {dimension_semantics = [#tpu.dimension_semantics<parallel>], iteration_bounds = array<i64: 1>, scalar_prefetch = 0 : i64, scratch_operands = 0 : i64, tpu.core_type = #tpu.core_type<tc>, window_params = [{transform_indices = @transform_0, window_bounds = array<i64: 8, 256>}, {pipeline_mode = #tpu.pipeline_mode<synchronous>, transform_indices = @transform_1, window_bounds = array<i64: 256, 256>}, {pipeline_mode = #tpu.pipeline_mode<synchronous>, transform_indices = @transform_2, window_bounds = array<i64: 1, 256>}, {transform_indices = @transform_3, window_bounds = array<i64: 8, 128>}, {transform_indices = @transform_4, window_bounds = array<i64: 8, 384>}]} {
    %c0 = arith.constant 0 : index
    %c0_0 = arith.constant 0 : index
    %0 = vector.load %arg1[%c0, %c0_0] : memref<8x256xf32, #tpu.memory_space<vmem>>, vector<8x256xf32>
    %1 = arith.truncf %0 : vector<8x256xf32> to vector<8x256xbf16>
    %c0_1 = arith.constant 0 : index
    %c0_2 = arith.constant 0 : index
    %2 = vector.load %arg2[%c0_1, %c0_2] : memref<256x256xbf16, #tpu.memory_space<vmem>>, vector<256x256xbf16>
    %cst = arith.constant dense<0.000000e+00> : vector<8x256xf32>
    %3 = tpu.matmul %1, %2, %cst {dimension_numbers = #tpu.dot_dimension_numbers<[1], [0], [0], [1], [0, 0, 1, 1], [], []>} : vector<8x256xbf16>, vector<256x256xbf16>, vector<8x256xf32> -> vector<8x256xf32>
    %c0_3 = arith.constant 0 : index
    %c0_4 = arith.constant 0 : index
    %4 = vector.load %arg3[%c0_3, %c0_4] : memref<1x256xf32, #tpu.memory_space<vmem>>, vector<1x256xf32>
    %5 = vector.broadcast %4 : vector<1x256xf32> to vector<8x256xf32>
    %6 = arith.addf %3, %5 : vector<8x256xf32>
    %cst_5 = arith.constant 0.000000e+00 : f32
    %7 = vector.broadcast %cst_5 : f32 to vector<8x256xf32>
    %8 = arith.maximumf %6, %7 : vector<8x256xf32>
    %9 = vector.extract_strided_slice %8 {offsets = [0, 0], sizes = [8, 128], strides = [1, 1]} : vector<8x256xf32> to vector<8x128xf32>
    %10 = vector.extract_strided_slice %8 {offsets = [0, 128], sizes = [8, 128], strides = [1, 1]} : vector<8x256xf32> to vector<8x128xf32>
    %cst_6 = arith.constant 5.000000e-01 : f32
    %11 = vector.broadcast %cst_6 : f32 to vector<8x128xf32>
    %12 = arith.mulf %11, %10 : vector<8x128xf32>
    %13 = math.exp %12 : vector<8x128xf32>
    %c0_7 = arith.constant 0 : index
    %c0_8 = arith.constant 0 : index
    %14 = vector.load %arg4[%c0_7, %c0_8] : memref<8x128xf32, #tpu.memory_space<vmem>>, vector<8x128xf32>
    %15 = arith.mulf %14, %13 : vector<8x128xf32>
    %16 = arith.addf %15, %9 : vector<8x128xf32>
    %17 = tpu.concatenate %16, %8 in 1 : vector<8x128xf32>, vector<8x256xf32> -> vector<8x384xf32>
    %c0_9 = arith.constant 0 : index
    %c0_10 = arith.constant 0 : index
    %18 = vector.load %arg5[%c0_9, %c0_10] : memref<8x384xf32, #tpu.memory_space<vmem>>, vector<8x384xf32>
    tpu.vector_store %arg5[%c0_9, %c0_10], %17 {strides = array<i32>} : memref<8x384xf32, #tpu.memory_space<vmem>>, vector<8x384xf32>,
    return
  }
  func.func @transform_0(%arg0: i32) -> (i32, i32) {
    %c0_i32 = arith.constant 0 : i32
    %c0_i32_0 = arith.constant 0 : i32
    return %arg0, %c0_i32 : i32, i32
  }
  func.func @transform_1(%arg0: i32) -> (i32, i32) {
    %c0_i32 = arith.constant 0 : i32
    %c0_i32_0 = arith.constant 0 : i32
    %c0_i32_1 = arith.constant 0 : i32
    return %c0_i32, %c0_i32_0 : i32, i32
  }
  func.func @transform_2(%arg0: i32) -> (i32, i32) {
    %c0_i32 = arith.constant 0 : i32
    %c0_i32_0 = arith.constant 0 : i32
    %c0_i32_1 = arith.constant 0 : i32
    return %c0_i32, %c0_i32_0 : i32, i32
  }
  func.func @transform_3(%arg0: i32) -> (i32, i32) {
    %c0_i32 = arith.constant 0 : i32
    %c0_i32_0 = arith.constant 0 : i32
    return %arg0, %c0_i32 : i32, i32
  }
  func.func @transform_4(%arg0: i32) -> (i32, i32) {
    %c0_i32 = arith.constant 0 : i32
    %c0_i32_0 = arith.constant 0 : i32
    return %arg0, %c0_i32 : i32, i32
  }
}

</mosaic_0001>

<llo_original>
// kernel: ca_net_forward.1
$region0: #{ca_net_forward.1}
  #allocation0 [shape = 'u32[]', space=smem, size = 0x4, offset = 0x4, fixed_abs, tag = 'smem constant byte address 0x4 - core index']
  #allocation1 [shape = 'u32[72,128]{1,0:T(1,128)}', space=vmem, size = 0x9000, scoped, tag = 'internal scratch']
  %s0 = inlined_call_operand.vmem [shape: f32[8,256], index: 0, kind: input, shape index: {}]
  %s1 = inlined_call_operand.hbm [shape: bf16[256,256], index: 1, kind: input, shape index: {}]
  %s2 = inlined_call_operand.vmem [shape: f32[1,256], index: 2, kind: input, shape index: {}]
  %s3 = inlined_call_operand.vmem [shape: f32[8,128], index: 3, kind: input, shape index: {}]
  %s4 = inlined_call_operand.vmem [shape: f32[8,384], index: 4, kind: output, shape index: {}]
  %s5 = sld [smem:[#allocation0]]
  $region30: #{ca_net_forward.1} parent=0
    _
  %s7 = ssub.s32 1, %s5
  %s8 = scalar_select 0, %s7, %s5
  $region1: #{ca_net_forward.1} parent=0
    #allocation2 [shape = 'u8[131072]{0}', space=vmem, size = 0x20000, scoped, tag = 'input window, operand 1, single buffered']
    #allocation3 [shape = 's32[1]{0}', space=sflag, size = 0x4, scoped, tag = 'scoped memory for ca_net_forward.1']
    %9 = vsyncpa [#allocation3], 0
    // Predicated region
    $region2: #{ca_net_forward.1} parent=1 // pred_check
      _
    $region3: #{ca_net_forward.1} parent=1 // pred_check_branch
      %11 = sbr.rel (0) target = $region5
    $region4: #{ca_net_forward.1} parent=1 // pred_region
      _
    $region5: #{ca_net_forward.1} parent=1 // pred_fallthru
      _
    // Predicated region
    $region6: #{ca_net_forward.1} parent=1 // pred_check
      _
    $region7: #{ca_net_forward.1} parent=1 // pred_check_branch
      %13 = sbr.rel (0) target = $region9
    $region8: #{ca_net_forward.1} parent=1 // pred_region
      %15 = vsyncadd [#allocation3], 0
      %s16 = sshll.u32 %s1, 4
      %s17 = int_to_ptr.hbm [resolvable:$true] %s16
      %s18 = sshll.u32 [#allocation2], 4
      %s19 = int_to_ptr.vmem [resolvable:$true] %s18
      %24 = dma.hbm_to_vmem [thread:$0]  %s17, 4096, %s19, [#allocation3], 128, 128, 8
    $region9: #{ca_net_forward.1} parent=1 // pred_fallthru
      _
    // Predicated region
    $region10: #{ca_net_forward.1} parent=1 // pred_check
      _
    $region11: #{ca_net_forward.1} parent=1 // pred_check_branch
      %26 = sbr.rel (0) target = $region13
    $region12: #{ca_net_forward.1} parent=1 // pred_region
      _
    $region13: #{ca_net_forward.1} parent=1 // pred_fallthru
      _
    // Predicated region
    $region14: #{ca_net_forward.1} parent=1 // pred_check
      _
    $region15: #{ca_net_forward.1} parent=1 // pred_check_branch
      %28 = sbr.rel (0) target = $region17
    $region16: #{ca_net_forward.1} parent=1 // pred_region
      _
    $region17: #{ca_net_forward.1} parent=1 // pred_fallthru
      _
    // Predicated region
    $region18: #{ca_net_forward.1} parent=1 // pred_check
      _
    $region19: #{ca_net_forward.1} parent=1 // pred_check_branch
      %30 = sbr.rel (0) target = $region21
    $region20: #{ca_net_forward.1} parent=1 // pred_region
      %32 = dma.done [#allocation3], 4096
    $region21: #{ca_net_forward.1} parent=1 // pred_fallthru
      _
    %v33 = vld [vmem:[%s0] sm:$0xff]
    %v34 = vld [vmem:[%s0 + $0x8] sm:$0xff]
    %v35 = vpack.c.bf16 %v33, %v33
    %v36 = vpack.c.bf16 %v34, %v34
    %v37 = vld [vmem:[#allocation2] sm:$0xff]
    %v38 = vld [vmem:[#allocation2 + $0x8] sm:$0xff]
    %v39 = vld [vmem:[#allocation2 + $0x10] sm:$0xff]
    %v40 = vld [vmem:[#allocation2 + $0x18] sm:$0xff]
    %v41 = vld [vmem:[#allocation2 + $0x20] sm:$0xff]
    %v42 = vld [vmem:[#allocation2 + $0x28] sm:$0xff]
    %v43 = vld [vmem:[#allocation2 + $0x30] sm:$0xff]
    %v44 = vld [vmem:[#allocation2 + $0x38] sm:$0xff]
    %v45 = vld [vmem:[#allocation2 + $0x40] sm:$0xff]
    %v46 = vld [vmem:[#allocation2 + $0x48] sm:$0xff]
    %v47 = vld [vmem:[#allocation2 + $0x50] sm:$0xff]
    %v48 = vld [vmem:[#allocation2 + $0x58] sm:$0xff]
    %v49 = vld [vmem:[#allocation2 + $0x60] sm:$0xff]
    %v50 = vld [vmem:[#allocation2 + $0x68] sm:$0xff]
    %v51 = vld [vmem:[#allocation2 + $0x70] sm:$0xff]
    %v52 = vld [vmem:[#allocation2 + $0x78] sm:$0xff]
    %v53 = vld [vmem:[#allocation2 + $0x80] sm:$0xff]
    %v54 = vld [vmem:[#allocation2 + $0x88] sm:$0xff]
    %v55 = vld [vmem:[#allocation2 + $0x90] sm:$0xff]
    %v56 = vld [vmem:[#allocation2 + $0x98] sm:$0xff]
    %v57 = vld [vmem:[#allocation2 + $0xa0] sm:$0xff]
    %v58 = vld [vmem:[#allocation2 + $0xa8] sm:$0xff]
    %v59 = vld [vmem:[#allocation2 + $0xb0] sm:$0xff]
    %v60 = vld [vmem:[#allocation2 + $0xb8] sm:$0xff]
    %v61 = vld [vmem:[#allocation2 + $0xc0] sm:$0xff]
    %v62 = vld [vmem:[#allocation2 + $0xc8] sm:$0xff]
    %v63 = vld [vmem:[#allocation2 + $0xd0] sm:$0xff]
    %v64 = vld [vmem:[#allocation2 + $0xd8] sm:$0xff]
    %v65 = vld [vmem:[#allocation2 + $0xe0] sm:$0xff]
    %v66 = vld [vmem:[#allocation2 + $0xe8] sm:$0xff]
    %v67 = vld [vmem:[#allocation2 + $0xf0] sm:$0xff]
    %v68 = vld [vmem:[#allocation2 + $0xf8] sm:$0xff]
    %v69 = vld [vmem:[%s2] sm:$0x3]
    %v71 = vperm.slane %v69, 0
    %v72 = vperm.slane %v69, 1
    %v107 = vunpack.c.l.b16 %v37
    %v108 = vunpack.c.h.b16 %v37
    %v109 = vunpack.c.l.b16 %v38
    %v110 = vunpack.c.h.b16 %v38
    %v111 = vunpack.c.l.b16 %v39
    %v112 = vunpack.c.h.b16 %v39
    %v113 = vunpack.c.l.b16 %v40
    %v114 = vunpack.c.h.b16 %v40
    %v115 = vunpack.c.l.b16 %v41
    %v116 = vunpack.c.h.b16 %v41
    %v117 = vunpack.c.l.b16 %v42
    %v118 = vunpack.c.h.b16 %v42
    %v119 = vunpack.c.l.b16 %v43
    %v120 = vunpack.c.h.b16 %v43
    %v121 = vunpack.c.l.b16 %v44
    %v122 = vunpack.c.h.b16 %v44
    %v123 = vunpack.c.l.b16 %v45
    %v124 = vunpack.c.h.b16 %v45
    %v125 = vunpack.c.l.b16 %v46
    %v126 = vunpack.c.h.b16 %v46
    %v127 = vunpack.c.l.b16 %v47
    %v128 = vunpack.c.h.b16 %v47
    %v129 = vunpack.c.l.b16 %v48
    %v130 = vunpack.c.h.b16 %v48
    %v131 = vunpack.c.l.b16 %v49
    %v132 = vunpack.c.h.b16 %v49
    %v133 = vunpack.c.l.b16 %v50
    %v134 = vunpack.c.h.b16 %v50
    %v135 = vunpack.c.l.b16 %v51
    %v136 = vunpack.c.h.b16 %v51
    %v137 = vunpack.c.l.b16 %v52
    %v138 = vunpack.c.h.b16 %v52
    %v139 = vunpack.c.l.b16 %v53
    %v140 = vunpack.c.h.b16 %v53
    %v141 = vunpack.c.l.b16 %v54
    %v142 = vunpack.c.h.b16 %v54
    %v143 = vunpack.c.l.b16 %v55
    %v144 = vunpack.c.h.b16 %v55
    %v145 = vunpack.c.l.b16 %v56
    %v146 = vunpack.c.h.b16 %v56
    %v147 = vunpack.c.l.b16 %v57
    %v148 = vunpack.c.h.b16 %v57
    %v149 = vunpack.c.l.b16 %v58
    %v150 = vunpack.c.h.b16 %v58
    %v151 = vunpack.c.l.b16 %v59
    %v152 = vunpack.c.h.b16 %v59
    %v153 = vunpack.c.l.b16 %v60
    %v154 = vunpack.c.h.b16 %v60
    %v155 = vunpack.c.l.b16 %v61
    %v156 = vunpack.c.h.b16 %v61
    %v157 = vunpack.c.l.b16 %v62
    %v158 = vunpack.c.h.b16 %v62
    %v159 = vunpack.c.l.b16 %v63
    %v160 = vunpack.c.h.b16 %v63
    %v161 = vunpack.c.l.b16 %v64
    %v162 = vunpack.c.h.b16 %v64
    %v163 = vunpack.c.l.b16 %v65
    %v164 = vunpack.c.h.b16 %v65
    %v165 = vunpack.c.l.b16 %v66
    %v166 = vunpack.c.h.b16 %v66
    %v167 = vunpack.c.l.b16 %v67
    %v168 = vunpack.c.h.b16 %v67
    %v169 = vunpack.c.l.b16 %v68
    %v170 = vunpack.c.h.b16 %v68
    %v171 = vpack.c.b16 %v109, %v107
    %v172 = vpack.c.b16 %v110, %v108
    %v173 = vpack.c.b16 %v113, %v111
    %v174 = vpack.c.b16 %v114, %v112
    %v175 = vpack.c.b16 %v117, %v115
    %v176 = vpack.c.b16 %v118, %v116
    %v177 = vpack.c.b16 %v121, %v119
    %v178 = vpack.c.b16 %v122, %v120
    %v179 = vpack.c.b16 %v125, %v123
    %v180 = vpack.c.b16 %v126, %v124
    %v181 = vpack.c.b16 %v129, %v127
    %v182 = vpack.c.b16 %v130, %v128
    %v183 = vpack.c.b16 %v133, %v131
    %v184 = vpack.c.b16 %v134, %v132
    %v185 = vpack.c.b16 %v137, %v135
    %v186 = vpack.c.b16 %v138, %v136
    %v187 = vpack.c.b16 %v141, %v139
    %v188 = vpack.c.b16 %v142, %v140
    %v189 = vpack.c.b16 %v145, %v143
    %v190 = vpack.c.b16 %v146, %v144
    %v191 = vpack.c.b16 %v149, %v147
    %v192 = vpack.c.b16 %v150, %v148
    %v193 = vpack.c.b16 %v153, %v151
    %v194 = vpack.c.b16 %v154, %v152
    %v195 = vpack.c.b16 %v157, %v155
    %v196 = vpack.c.b16 %v158, %v156
    %v197 = vpack.c.b16 %v161, %v159
    %v198 = vpack.c.b16 %v162, %v160
    %v199 = vpack.c.b16 %v165, %v163
    %v200 = vpack.c.b16 %v166, %v164
    %v201 = vpack.c.b16 %v169, %v167
    %v202 = vpack.c.b16 %v170, %v168
    %235 = vmatpush.bf16.msra.mxu0 %v185
    %236 = vmatpush.bf16.msra.mxu0 %v183
    %237 = vmatpush.bf16.msra.mxu0 %v181
    %238 = vmatpush.bf16.msra.mxu0 %v179
    %239 = vmatpush.bf16.msra.mxu0 %v177
    %240 = vmatpush.bf16.msra.mxu0 %v175
    %241 = vmatpush.bf16.msra.mxu0 %v173
    %242 = vmatpush.bf16.msra.mxu0 %v171
    %243 = vmatmul.bf16.gmra.mxu0 %v35
    %v244 = vpop.f32.mrf.mxu0
    %v245 = vadd.f32 %v71, %v244
    %v246 = vpop.f32.mrf.mxu0
    %247 = vdwg.mxu0
    %248 = vmatpush.bf16.msra.mxu0 %v201
    %249 = vmatpush.bf16.msra.mxu0 %v199
    %250 = vmatpush.bf16.msra.mxu0 %v197
    %251 = vmatpush.bf16.msra.mxu0 %v195
    %252 = vmatpush.bf16.msra.mxu0 %v193
    %253 = vmatpush.bf16.msra.mxu0 %v191
    %254 = vmatpush.bf16.msra.mxu0 %v189
    %255 = vmatpush.bf16.msra.mxu0 %v187
    %256 = vmatmul.bf16.gmra.mxu0 %v36
    %v257 = vpop.f32.mrf.mxu0
    %v258 = vadd.f32 %v245, %v257
    %v259 = vpop.f32.mrf.mxu0
    %260 = vdwg.mxu0
    %261 = vmatpush.bf16.msra.mxu0 %v186
    %262 = vmatpush.bf16.msra.mxu0 %v184
    %263 = vmatpush.bf16.msra.mxu0 %v182
    %264 = vmatpush.bf16.msra.mxu0 %v180
    %265 = vmatpush.bf16.msra.mxu0 %v178
    %266 = vmatpush.bf16.msra.mxu0 %v176
    %267 = vmatpush.bf16.msra.mxu0 %v174
    %268 = vmatpush.bf16.msra.mxu0 %v172
    %269 = vmatmul.bf16.gmra.mxu0 %v35
    %v270 = vpop.f32.mrf.mxu0
    %v271 = vadd.f32 %v72, %v270
    %v272 = vpop.f32.mrf.mxu0
    %273 = vdwg.mxu0
    %274 = vmatpush.bf16.msra.mxu0 %v202
    %275 = vmatpush.bf16.msra.mxu0 %v200
    %276 = vmatpush.bf16.msra.mxu0 %v198
    %277 = vmatpush.bf16.msra.mxu0 %v196
    %278 = vmatpush.bf16.msra.mxu0 %v194
    %279 = vmatpush.bf16.msra.mxu0 %v192
    %280 = vmatpush.bf16.msra.mxu0 %v190
    %281 = vmatpush.bf16.msra.mxu0 %v188
    %282 = vmatmul.bf16.gmra.mxu0 %v36
    %v283 = vpop.f32.mrf.mxu0
    %v284 = vadd.f32 %v271, %v283
    %v285 = vpop.f32.mrf.mxu0
    %286 = vdwg.mxu0
    %v287 = vmax.f32 %v258, 0.0
    %v288 = vmax.f32 %v284, 0.0
    %v289 = vmul.f32 %v288, 0.5
    %v290 = vmul.f32 %v289, 1.442695
    %v291 = vpow.pop %v290
    %v292 = vld [vmem:[%s3] sm:$0xff]
    %v293 = vmul.f32 %v292, %v291
    %v294 = vadd.f32 %v293, %v287
    %295 = vst [vmem:[%s4] sm:$0xff] %v294
    %296 = vst [vmem:[%s4 + $0x8] sm:$0xff] %v287
    %297 = vst [vmem:[%s4 + $0x10] sm:$0xff] %v288
    // Predicated region
    $region22: #{ca_net_forward.1} parent=1 // pred_check
      _
    $region23: #{ca_net_forward.1} parent=1 // pred_check_branch
      %299 = sbr.rel (0) target = $region25
    $region24: #{ca_net_forward.1} parent=1 // pred_region
      _
    $region25: #{ca_net_forward.1} parent=1 // pred_fallthru
      _
    // Predicated region
    $region26: #{ca_net_forward.1} parent=1 // pred_check
      _
    $region27: #{ca_net_forward.1} parent=1 // pred_check_branch
      %301 = sbr.rel (0) target = $region29
    $region28: #{ca_net_forward.1} parent=1 // pred_region
      _
    $region29: #{ca_net_forward.1} parent=1 // pred_fallthru
      _
    %302 = vsyncpa [#allocation3], 1

</llo_original>
